<compile_context>
chip_gen: v7x
topology: tpu7x:2x2x1
jax: 0.10.0
libtpu: 0.0.40
codegen_flags: <defaults>
</compile_context>

<pallas_src>
from functools import partial

import jax
import jax.numpy as jnp
from jax.experimental import pallas as pl
from jax.experimental.pallas import tpu as pltpu


_VMEM_LIMIT = 32 * 1024 * 1024  # safe scoped-VMEM limit on v5e/v6e/v7x


def _cparams(*sem):
    return pltpu.CompilerParams(dimension_semantics=sem,
                                vmem_limit_bytes=_VMEM_LIMIT)


def _pick_tile(n, target=512):
    """Largest divisor of n that is a multiple of 8 and <= target (else n)."""
    best = n
    for d in range(8, min(n, target) + 1, 8):
        if n % d == 0:
            best = d
    return best


def _conv_tile(length, min_tile, target=512):
    """Largest multiple-of-8 divisor of `length` <= target that is >= min_tile."""
    best = length
    for d in range(8, min(length, target) + 1, 8):
        if length % d == 0 and d >= min_tile:
            best = d
    return best


# ----------------------------------------------------------------------------
# In-kernel helpers
# ----------------------------------------------------------------------------
def _gelu_tanh(x):
    # TODO(synk): PyTorch nn.GELU() default is erf-exact; tanh approximation used
    # (FeedForward internals of LocalTransformerBlock were not provided).
    c = jnp.float32(0.7978845608028654)  # sqrt(2/pi)
    return 0.5 * x * (1.0 + jnp.tanh(c * (x + 0.044715 * x * x * x)))


def _layernorm(x, g, b):
    mu = jnp.mean(x, axis=-1, keepdims=True)
    var = jnp.mean((x - mu) ** 2, axis=-1, keepdims=True)
    return (x - mu) * jax.lax.rsqrt(var + 1e-5) * g + b


# ----------------------------------------------------------------------------
# Pallas kernels
# ----------------------------------------------------------------------------
def _ln_matmul_kernel(x_ref, g_ref, b_ref, w_ref, o_ref):
    # Fused LayerNorm -> matmul (bias-free projection, e.g. QKV).
    h = _layernorm(x_ref[...], g_ref[...], b_ref[...])
    o_ref[...] = jnp.dot(h.astype(jnp.bfloat16), w_ref[...],
                         preferred_element_type=jnp.float32)


def _matmul_residual_kernel(h_ref, w_ref, r_ref, o_ref):
    # Fused out-projection + residual add.
    y = jnp.dot(h_ref[...].astype(jnp.bfloat16), w_ref[...],
                preferred_element_type=jnp.float32)
    o_ref[...] = y + r_ref[...]


def _ffn_kernel(x_ref, g_ref, b_ref, w1_ref, b1_ref, w2_ref, b2_ref, o_ref):
    # Fused LayerNorm -> FF1 (gelu) -> FF2 -> residual.
    x = x_ref[...]
    h = _layernorm(x, g_ref[...], b_ref[...])
    h = jnp.dot(h.astype(jnp.bfloat16), w1_ref[...],
                preferred_element_type=jnp.float32) + b1_ref[...]
    h = _gelu_tanh(h)
    y = jnp.dot(h.astype(jnp.bfloat16), w2_ref[...],
                preferred_element_type=jnp.float32) + b2_ref[...]
    o_ref[...] = x + y


def _local_attn_kernel(q_ref, kc_ref, kp_ref, vc_ref, vp_ref, o_ref, *,
                       scale, window):
    # One (batch*head, query-window) block of local causal attention.
    # Keys/values are the current window (causal) + previous window (full),
    # which matches mask: (j <= i) & (j >= (i // window) * window - window).
    wi = pl.program_id(1)
    q = q_ref[0].astype(jnp.bfloat16)       # (W, dh)
    kc = kc_ref[0].astype(jnp.bfloat16)
    kp = kp_ref[0].astype(jnp.bfloat16)
    dims = (((1,), (1,)), ((), ()))
    s_c = jax.lax.dot_general(q, kc, dims,
                              preferred_element_type=jnp.float32) * scale
    s_p = jax.lax.dot_general(q, kp, dims,
                              preferred_element_type=jnp.float32) * scale
    i = jax.lax.broadcasted_iota(jnp.int32, (window, window), 0)
    j = jax.lax.broadcasted_iota(jnp.int32, (window, window), 1)
    neg = jnp.float32(-1e30)
    s_c = jnp.where(j <= i, s_c, neg)                 # causal within window
    s_p = s_p + jnp.where(wi > 0, 0.0, neg)           # no previous window at wi==0
    m = jnp.maximum(jnp.max(s_c, axis=-1, keepdims=True),
                    jnp.max(s_p, axis=-1, keepdims=True))
    e_c = jnp.exp(s_c - m)
    e_p = jnp.exp(s_p - m)
    denom = jnp.sum(e_c, axis=-1, keepdims=True) + jnp.sum(e_p, axis=-1, keepdims=True)
    inv = pl.reciprocal(denom, approx=True)
    pc = (e_c * inv).astype(jnp.bfloat16)
    pp = (e_p * inv).astype(jnp.bfloat16)
    o = (jnp.dot(pc, vc_ref[0].astype(jnp.bfloat16), preferred_element_type=jnp.float32)
         + jnp.dot(pp, vp_ref[0].astype(jnp.bfloat16), preferred_element_type=jnp.float32))
    o_ref[0] = o


def _causal_conv_kernel(xc_ref, xp_ref, w_ref, b_ref, *rest, K, dilation,
                        use_prev, activation, has_residual):
    # xc_ref: current (1, TL, Cin) tile; xp_ref: previous tile of the same array
    # (halo source).  Causal zero left-padding is reproduced by masking the halo
    # on the first tile.  ctx_ref is a VMEM scratch assembled with aligned stores
    # so the per-tap shifted views are plain (proven) offset loads.
    if has_residual:
        r_ref, o_ref, ctx_ref = rest
    else:
        r_ref = None
        o_ref, ctx_ref = rest
    cur = xc_ref[0]                                    # (TL, Cin) f32
    TL, cin = cur.shape
    cout = o_ref.shape[-1]
    pad = dilation * (K - 1)
    if pad > 0:
        padr = ((pad + 7) // 8) * 8                    # 8-aligned halo size
        if use_prev:
            halo = xp_ref[0, TL - padr:, :]
            halo = halo * jnp.where(pl.program_id(1) > 0, 1.0, 0.0)
        else:
            halo = jnp.zeros((padr, cin), jnp.float32)
        ctx_ref[0:padr, :] = halo
        ctx_ref[padr:padr + TL, :] = cur
        base = padr - pad
        acc = jnp.zeros((TL, cout), jnp.float32)
        for k in range(K):                             # K <= 7, static unroll
            off = base + k * dilation
            acc = acc + jnp.dot(ctx_ref[off:off + TL, :].astype(jnp.bfloat16),
                                w_ref[k], preferred_element_type=jnp.float32)
    else:
        acc = jnp.dot(cur.astype(jnp.bfloat16), w_ref[0],
                      preferred_element_type=jnp.float32)
    y = acc + b_ref[...]
    if activation == "elu":
        y = jnp.where(y > 0.0, y, jnp.exp(jnp.minimum(y, 0.0)) - 1.0)
    if has_residual:
        y = y + r_ref[0]
    o_ref[0] = y


def _conv_transpose_kernel(xc_ref, xp_ref, wa_ref, wb_ref, b_ref, o_ref, ctx_ref,
                           *, use_prev):
    # CausalConvTranspose1d(kernel=2*stride, stride): for t = q*stride + r,
    #   out[t] = x[q] @ W[r] + x[q-1] @ W[r+stride]
    # All `stride` phases are produced at once with weights packed so the output
    # block is lane-dense (TL, stride*Cout); the (B, L*stride, Cout) layout is a
    # free row-major reshape on the host (no transpose).
    cur = xc_ref[0]                                    # (TL, Cin)
    TL, cin = cur.shape
    if use_prev:
        halo = xp_ref[0, TL - 8:, :]
        halo = halo * jnp.where(pl.program_id(1) > 0, 1.0, 0.0)
    else:
        halo = jnp.zeros((8, cin), jnp.float32)
    ctx_ref[0:8, :] = halo
    ctx_ref[8:8 + TL, :] = cur
    xm1 = ctx_ref[7:7 + TL, :].astype(jnp.bfloat16)    # x[q-1]
    xq = cur.astype(jnp.bfloat16)                      # x[q]
    y = (jnp.dot(xq, wa_ref[...], preferred_element_type=jnp.float32)
         + jnp.dot(xm1, wb_ref[...], preferred_element_type=jnp.float32)
         + b_ref[...])
    o_ref[0] = y


# ----------------------------------------------------------------------------
# Pallas wrappers
# ----------------------------------------------------------------------------
def fused_ln_matmul(x2d, g, b, w_bf16):
    M, D = x2d.shape
    N = w_bf16.shape[1]
    TM = _pick_tile(M)
    return pl.pallas_call(
        _ln_matmul_kernel,
        out_shape=jax.ShapeDtypeStruct((M, N), jnp.float32),
        grid=(M // TM,),
        in_specs=[pl.BlockSpec((TM, D), lambda i: (i, 0)),
                  pl.BlockSpec((1, D), lambda i: (0, 0)),
                  pl.BlockSpec((1, D), lambda i: (0, 0)),
                  pl.BlockSpec((D, N), lambda i: (0, 0))],
        out_specs=pl.BlockSpec((TM, N), lambda i: (i, 0)),
        compiler_params=_cparams("parallel"),
    )(x2d, g.reshape(1, D), b.reshape(1, D), w_bf16)


def fused_matmul_residual(h2d, w_bf16, res2d):
    M, Kd = h2d.shape
    N = w_bf16.shape[1]
    TM = _pick_tile(M)
    return pl.pallas_call(
        _matmul_residual_kernel,
        out_shape=jax.ShapeDtypeStruct((M, N), jnp.float32),
        grid=(M // TM,),
        in_specs=[pl.BlockSpec((TM, Kd), lambda i: (i, 0)),
                  pl.BlockSpec((Kd, N), lambda i: (0, 0)),
                  pl.BlockSpec((TM, N), lambda i: (i, 0))],
        out_specs=pl.BlockSpec((TM, N), lambda i: (i, 0)),
        compiler_params=_cparams("parallel"),
    )(h2d, w_bf16, res2d)


def fused_ffn(x2d, g, b, w1_bf16, b1, w2_bf16, b2):
    M, D = x2d.shape
    H = w1_bf16.shape[1]
    TM = _pick_tile(M)
    return pl.pallas_call(
        _ffn_kernel,
        out_shape=jax.ShapeDtypeStruct((M, D), jnp.float32),
        grid=(M // TM,),
        in_specs=[pl.BlockSpec((TM, D), lambda i: (i, 0)),
                  pl.BlockSpec((1, D), lambda i: (0, 0)),
                  pl.BlockSpec((1, D), lambda i: (0, 0)),
                  pl.BlockSpec((D, H), lambda i: (0, 0)),
                  pl.BlockSpec((1, H), lambda i: (0, 0)),
                  pl.BlockSpec((H, D), lambda i: (0, 0)),
                  pl.BlockSpec((1, D), lambda i: (0, 0))],
        out_specs=pl.BlockSpec((TM, D), lambda i: (i, 0)),
        compiler_params=_cparams("parallel"),
    )(x2d, g.reshape(1, D), b.reshape(1, D), w1_bf16, b1.reshape(1, H),
      w2_bf16, b2.reshape(1, D))


def local_causal_attention(q, k, v, window):
    # q, k, v: (B*H, L, dh) f32
    BH, L, dh = q.shape
    W = window
    assert W % 8 == 0, "window_size must be a multiple of 8 for this kernel"
    Lp = ((L + W - 1) // W) * W
    if Lp != L:
        padn = Lp - L
        q = jnp.pad(q, ((0, 0), (0, padn), (0, 0)))
        k = jnp.pad(k, ((0, 0), (0, padn), (0, 0)))
        v = jnp.pad(v, ((0, 0), (0, padn), (0, 0)))
    nW = Lp // W
    scale = float(dh) ** -0.5
    cur = pl.BlockSpec((1, W, dh), lambda b, w: (b, w, 0))
    prv = pl.BlockSpec((1, W, dh), lambda b, w: (b, jnp.maximum(w - 1, 0), 0))
    out = pl.pallas_call(
        partial(_local_attn_kernel, scale=scale, window=W),
        out_shape=jax.ShapeDtypeStruct((BH, Lp, dh), jnp.float32),
        grid=(BH, nW),
        in_specs=[cur, cur, prv, cur, prv],
        out_specs=cur,
        compiler_params=_cparams("parallel", "arbitrary"),
    )(q, k, k, v, v)
    return out[:, :L, :] if Lp != L else out


def causal_conv1d(x, w, b, *, dilation=1, activation="none", residual=None):
    # x: (B, L, Cin); w: (K, Cin, Cout); b: (Cout,)
    # TODO(synk): osu_vqvae CausalConv1d pad mode not shown; zero left-padding assumed.
    B, L, Cin = x.shape
    K, _, Cout = w.shape
    pad = dilation * (K - 1)
    padr = ((pad + 7) // 8) * 8 if pad > 0 else 0
    TL = _conv_tile(L, padr)
    nT = L // TL
    use_prev = pad > 0 and TL >= padr
    has_res = residual is not None
    wq = w.astype(jnp.bfloat16)
    kernel = partial(_causal_conv_kernel, K=K, dilation=dilation,
                     use_prev=use_prev, activation=activation,
                     has_residual=has_res)
    xspec = pl.BlockSpec((1, TL, Cin), lambda bb, tt: (bb, tt, 0))
    pspec = pl.BlockSpec((1, TL, Cin), lambda bb, tt: (bb, jnp.maximum(tt - 1, 0), 0))
    in_specs = [xspec, pspec,
                pl.BlockSpec((K, Cin, Cout), lambda bb, tt: (0, 0, 0)),
                pl.BlockSpec((1, Cout), lambda bb, tt: (0, 0))]
    args = [x, x, wq, b.reshape(1, Cout)]
    if has_res:
        in_specs.append(pl.BlockSpec((1, TL, Cout), lambda bb, tt: (bb, tt, 0)))
        args.append(residual)
    return pl.pallas_call(
        kernel,
        out_shape=jax.ShapeDtypeStruct((B, L, Cout), jnp.float32),
        grid=(B, nT),
        in_specs=in_specs,
        out_specs=pl.BlockSpec((1, TL, Cout), lambda bb, tt: (bb, tt, 0)),
        scratch_shapes=[pltpu.VMEM((TL + padr, Cin), jnp.float32)],
        compiler_params=_cparams("parallel", "arbitrary"),
    )(*args)


def causal_conv_transpose1d(x, w, b, *, stride):
    # x: (B, L, Cin); w: (2*stride, Cin, Cout); b: (Cout,)
    B, L, Cin = x.shape
    K, _, Cout = w.shape
    assert K == 2 * stride
    # Pack weights so one output block holds all `stride` phases (lane-dense).
    wa = jnp.transpose(w[:stride], (1, 0, 2)).reshape(Cin, stride * Cout).astype(jnp.bfloat16)
    wb = jnp.transpose(w[stride:], (1, 0, 2)).reshape(Cin, stride * Cout).astype(jnp.bfloat16)
    bb = jnp.tile(b, stride).reshape(1, stride * Cout)
    TL = _conv_tile(L, 8)
    nT = L // TL
    use_prev = TL >= 8
    xspec = pl.BlockSpec((1, TL, Cin), lambda i, t: (i, t, 0))
    pspec = pl.BlockSpec((1, TL, Cin), lambda i, t: (i, jnp.maximum(t - 1, 0), 0))
    out = pl.pallas_call(
        partial(_conv_transpose_kernel, use_prev=use_prev),
        out_shape=jax.ShapeDtypeStruct((B, L, stride * Cout), jnp.float32),
        grid=(B, nT),
        in_specs=[xspec, pspec,
                  pl.BlockSpec((Cin, stride * Cout), lambda i, t: (0, 0)),
                  pl.BlockSpec((Cin, stride * Cout), lambda i, t: (0, 0)),
                  pl.BlockSpec((1, stride * Cout), lambda i, t: (0, 0))],
        out_specs=pl.BlockSpec((1, TL, stride * Cout), lambda i, t: (i, t, 0)),
        scratch_shapes=[pltpu.VMEM((TL + 8, Cin), jnp.float32)],
        compiler_params=_cparams("parallel", "arbitrary"),
    )(x, x, wa, wb, bb)
    # (B, L, stride*Cout) row-major == (B, L*stride, Cout): free reshape.
    return out.reshape(B, L * stride, Cout)


# ----------------------------------------------------------------------------
# Model forward (glue around the kernels)
# ----------------------------------------------------------------------------
def local_transformer_block(x, layers, *, heads, dim_head, window_size):
    # TODO(synk): lucidrains LocalMHA rotary / positional-bias details not reproduced
    # (source not provided); plain pre-norm local-windowed causal MHA is used.
    B, L, D = x.shape
    inner = heads * dim_head
    for lp in layers:
        x2 = x.reshape(B * L, D)
        qkv = fused_ln_matmul(x2, lp["ln1_g"], lp["ln1_b"], lp["w_qkv"])  # (B*L, 3*inner)
        qkv = qkv.reshape(B, L, 3, heads, dim_head).transpose(2, 0, 3, 1, 4)
        q = qkv[0].reshape(B * heads, L, dim_head)
        k = qkv[1].reshape(B * heads, L, dim_head)
        v = qkv[2].reshape(B * heads, L, dim_head)
        o = local_causal_attention(q, k, v, window_size)                  # (B*H, L, dh)
        o = o.reshape(B, heads, L, dim_head).transpose(0, 2, 1, 3).reshape(B * L, inner)
        x2 = fused_matmul_residual(o, lp["w_out"], x2)                    # out-proj + residual
        x2 = fused_ffn(x2, lp["ln2_g"], lp["ln2_b"], lp["w_ff1"], lp["b_ff1"],
                       lp["w_ff2"], lp["b_ff2"])                          # LN+FF1+gelu+FF2+residual
        x = x2.reshape(B, L, D)
    return x


def decoder_ups(x, dec):
    # x: (B, L, dim_emb) channels-last
    x = causal_conv1d(x, dec["conv_in_w"], dec["conv_in_b"])
    for blk in dec["blocks"]:
        x = causal_conv_transpose1d(x, blk["up_w"], blk["up_b"], stride=blk["stride"])
        for res in blk["res"]:
            h = causal_conv1d(x, res["w1"], res["b1"],
                              dilation=res["dilation"], activation="elu")
            # second conv fuses the ELU and the residual add with x
            x = causal_conv1d(h, res["w2"], res["b2"], activation="elu", residual=x)
    x = causal_conv1d(x, dec["conv_out_w"], dec["conv_out_b"])
    return x


def decoder_attn_forward(x, params, *, heads, dim_head, window_size, use_tanh=False):
    # x: (B, L, dim_emb)  — PyTorch's (b, l, c) input
    x = local_transformer_block(x, params["attn"],
                                heads=heads, dim_head=dim_head, window_size=window_size)
    # PyTorch rearrange 'b l c -> b c l' + NCL convs == channels-last convs here.
    x = decoder_ups(x, params["dec"])
    if use_tanh:
        x = jnp.tanh(x)
    return jnp.transpose(x, (0, 2, 1))  # (B, dim_in, L_out), matching PyTorch output


# ----------------------------------------------------------------------------
# Deterministic parameter init (synthetic, matches module shapes)
# ----------------------------------------------------------------------------
def init_params(key, *, dim_in, dim_h, dim_emb,
                dim_h_mult=(1, 2, 4, 8), strides=(2, 2, 2, 2),
                res_dilations=(1, 3, 9),
                attn_depth=2, attn_heads=2, attn_dim_head=8):
    keys = iter(jax.random.split(key, 256))

    def nrm(shape, scale=0.02):
        return scale * jax.random.normal(next(keys), shape, jnp.float32)

    D = dim_emb
    inner = attn_heads * attn_dim_head
    attn_layers = []
    for _ in range(attn_depth):
        attn_layers.append(dict(
            ln1_g=jnp.ones((D,), jnp.float32), ln1_b=jnp.zeros((D,), jnp.float32),
            w_qkv=nrm((D, 3 * inner)).astype(jnp.bfloat16),
            w_out=nrm((inner, D)).astype(jnp.bfloat16),
            ln2_g=jnp.ones((D,), jnp.float32), ln2_b=jnp.zeros((D,), jnp.float32),
            w_ff1=nrm((D, 4 * D)).astype(jnp.bfloat16),
            b_ff1=jnp.zeros((4 * D,), jnp.float32),
            w_ff2=nrm((4 * D, D)).astype(jnp.bfloat16),
            b_ff2=jnp.zeros((D,), jnp.float32),
        ))

    dims_h = (dim_h,) + tuple(dim_h * m for m in dim_h_mult)
    strides_rev = tuple(reversed(strides))
    in_out = tuple(reversed(tuple(zip(dims_h[:-1], dims_h[1:]))))

    blocks = []
    for ind, (layer_dim_out, layer_dim_in) in enumerate(in_out):
        s = strides_rev[ind]
        res = []
        for d in res_dilations:
            res.append(dict(
                dilation=d,
                w1=nrm((7, layer_dim_out, layer_dim_out)),
                b1=jnp.zeros((layer_dim_out,), jnp.float32),
                w2=nrm((1, layer_dim_out, layer_dim_out)),
                b2=jnp.zeros((layer_dim_out,), jnp.float32)))
        blocks.append(dict(
            stride=s,
            up_w=nrm((2 * s, layer_dim_in, layer_dim_out)),   # (K, Cin, Cout)
            up_b=jnp.zeros((layer_dim_out,), jnp.float32),
            res=res))

    dec = dict(
        conv_in_w=nrm((7, dim_emb, dims_h[-1])),
        conv_in_b=jnp.zeros((dims_h[-1],), jnp.float32),
        blocks=blocks,
        conv_out_w=nrm((7, dims_h[0], dim_in)),
        conv_out_b=jnp.zeros((dim_in,), jnp.float32))

    return dict(attn=attn_layers, dec=dec)


# ----------------------------------------------------------------------------
if __name__ == "__main__":
    B, L = 2, 32
    dim_in, dim_h, dim_emb = 2, 4, 16
    attn_heads, attn_dim_head, attn_window = 2, 8, 8
    strides = (2, 2, 2, 2)

    root = jax.random.PRNGKey(0)
    kp, kx = jax.random.split(root)
    params = init_params(kp, dim_in=dim_in, dim_h=dim_h, dim_emb=dim_emb,
                         strides=strides, attn_depth=2,
                         attn_heads=attn_heads, attn_dim_head=attn_dim_head)

    x = jax.random.normal(kx, (B, L, dim_emb), jnp.float32)   # PyTorch (b, l, c)

    out = decoder_attn_forward(x, params, heads=attn_heads, dim_head=attn_dim_head,
                               window_size=attn_window, use_tanh=False)
    out = jax.block_until_ready(out)

    total_up = 1
    for s in strides:
        total_up *= s
    assert out.shape == (B, dim_in, L * total_up), out.shape
    assert bool(jnp.all(jnp.isfinite(out)))
    print("KERNEL_OK")
</pallas_src>

<mosaic_0001>
module attributes {stable_mosaic.version = 11 : i64} {
  func.func @_ln_matmul_kernel(%arg0: i32, %arg1: memref<64x16xf32, #tpu.memory_space<vmem>>, %arg2: memref<1x16xf32, #tpu.memory_space<vmem>>, %arg3: memref<1x16xf32, #tpu.memory_space<vmem>>, %arg4: memref<16x48xbf16, #tpu.memory_space<vmem>>, %arg5: memref<64x48xf32, #tpu.memory_space<vmem>>) attributes {dimension_semantics = [#tpu.dimension_semantics<parallel>], iteration_bounds = array<i64: 1>, scalar_prefetch = 0 : i64, scratch_operands = 0 : i64, tpu.core_type = #tpu.core_type<tc>, window_params = [{transform_indices = @transform_0, window_bounds = array<i64: 64, 16>}, {pipeline_mode = #tpu.pipeline_mode<synchronous>, transform_indices = @transform_1, window_bounds = array<i64: 1, 16>}, {pipeline_mode = #tpu.pipeline_mode<synchronous>, transform_indices = @transform_2, window_bounds = array<i64: 1, 16>}, {pipeline_mode = #tpu.pipeline_mode<synchronous>, transform_indices = @transform_3, window_bounds = array<i64: 16, 48>}, {transform_indices = @transform_4, window_bounds = array<i64: 64, 48>}]} {
    %c0 = arith.constant 0 : index
    %c0_0 = arith.constant 0 : index
    %0 = vector.load %arg1[%c0, %c0_0] : memref<64x16xf32, #tpu.memory_space<vmem>>, vector<64x16xf32>
    %c0_1 = arith.constant 0 : index
    %c0_2 = arith.constant 0 : index
    %1 = vector.load %arg2[%c0_1, %c0_2] : memref<1x16xf32, #tpu.memory_space<vmem>>, vector<1x16xf32>
    %c0_3 = arith.constant 0 : index
    %c0_4 = arith.constant 0 : index
    %2 = vector.load %arg3[%c0_3, %c0_4] : memref<1x16xf32, #tpu.memory_space<vmem>>, vector<1x16xf32>
    %cst = arith.constant dense<0.000000e+00> : vector<64xf32>
    %3 = vector.multi_reduction <add>, %0, %cst [1] : vector<64x16xf32> to vector<64xf32>
    %4 = vector.shape_cast %3 : vector<64xf32> to vector<64x1xf32>
    %cst_5 = arith.constant 1.600000e+01 : f32
    %5 = vector.broadcast %cst_5 : f32 to vector<64x1xf32>
    %6 = arith.divf %4, %5 : vector<64x1xf32>
    %7 = vector.broadcast %6 : vector<64x1xf32> to vector<64x16xf32>
    %8 = arith.subf %0, %7 : vector<64x16xf32>
    %9 = arith.mulf %8, %8 : vector<64x16xf32>
    %cst_6 = arith.constant dense<0.000000e+00> : vector<64xf32>
    %10 = vector.multi_reduction <add>, %9, %cst_6 [1] : vector<64x16xf32> to vector<64xf32>
    %11 = vector.shape_cast %10 : vector<64xf32> to vector<64x1xf32>
    %cst_7 = arith.constant 1.600000e+01 : f32
    %12 = vector.broadcast %cst_7 : f32 to vector<64x1xf32>
    %13 = arith.divf %11, %12 : vector<64x1xf32>
    %14 = vector.broadcast %6 : vector<64x1xf32> to vector<64x16xf32>
    %15 = arith.subf %0, %14 : vector<64x16xf32>
    %cst_8 = arith.constant 9.99999974E-6 : f32
    %16 = vector.broadcast %cst_8 : f32 to vector<64x1xf32>
    %17 = arith.addf %13, %16 : vector<64x1xf32>
    %18 = math.rsqrt %17 : vector<64x1xf32>
    %19 = vector.broadcast %18 : vector<64x1xf32> to vector<64x16xf32>
    %20 = arith.mulf %15, %19 : vector<64x16xf32>
    %21 = vector.broadcast %1 : vector<1x16xf32> to vector<64x16xf32>
    %22 = arith.mulf %20, %21 : vector<64x16xf32>
    %23 = vector.broadcast %2 : vector<1x16xf32> to vector<64x16xf32>
    %24 = arith.addf %22, %23 : vector<64x16xf32>
    %25 = arith.truncf %24 : vector<64x16xf32> to vector<64x16xbf16>
    %c0_9 = arith.constant 0 : index
    %c0_10 = arith.constant 0 : index
    %26 = vector.load %arg4[%c0_9, %c0_10] : memref<16x48xbf16, #tpu.memory_space<vmem>>, vector<16x48xbf16>
    %cst_11 = arith.constant dense<0.000000e+00> : vector<64x48xf32>
    %27 = tpu.matmul %25, %26, %cst_11 {dimension_numbers = #tpu.dot_dimension_numbers<[1], [0], [0], [1], [0, 0, 1, 1], [], []>} : vector<64x16xbf16>, vector<16x48xbf16>, vector<64x48xf32> -> vector<64x48xf32>
    %c0_12 = arith.constant 0 : index
    %c0_13 = arith.constant 0 : index
    %28 = vector.load %arg5[%c0_12, %c0_13] : memref<64x48xf32, #tpu.memory_space<vmem>>, vector<64x48xf32>
    tpu.vector_store %arg5[%c0_12, %c0_13], %27 {strides = array<i32>} : memref<64x48xf32, #tpu.memory_space<vmem>>, vector<64x48xf32>,
    return
  }
  func.func @transform_0(%arg0: i32) -> (i32, i32) {
    %c0_i32 = arith.constant 0 : i32
    %c0_i32_0 = arith.constant 0 : i32
    return %arg0, %c0_i32 : i32, i32
  }
  func.func @transform_1(%arg0: i32) -> (i32, i32) {
    %c0_i32 = arith.constant 0 : i32
    %c0_i32_0 = arith.constant 0 : i32
    %c0_i32_1 = arith.constant 0 : i32
    return %c0_i32, %c0_i32_0 : i32, i32
  }
  func.func @transform_2(%arg0: i32) -> (i32, i32) {
    %c0_i32 = arith.constant 0 : i32
    %c0_i32_0 = arith.constant 0 : i32
    %c0_i32_1 = arith.constant 0 : i32
    return %c0_i32, %c0_i32_0 : i32, i32
  }
  func.func @transform_3(%arg0: i32) -> (i32, i32) {
    %c0_i32 = arith.constant 0 : i32
    %c0_i32_0 = arith.constant 0 : i32
    %c0_i32_1 = arith.constant 0 : i32
    return %c0_i32, %c0_i32_0 : i32, i32
  }
  func.func @transform_4(%arg0: i32) -> (i32, i32) {
    %c0_i32 = arith.constant 0 : i32
    %c0_i32_0 = arith.constant 0 : i32
    return %arg0, %c0_i32 : i32, i32
  }
}

</mosaic_0001>

<llo_original>
// kernel: tpu_custom_call.1
$region0: #{tpu_custom_call.1}
  #allocation0 [shape = 'u32[]', space=smem, size = 0x4, offset = 0x4, fixed_abs, tag = 'smem constant byte address 0x4 - core index']
  #allocation1 [shape = 'u32[144,128]{1,0:T(1,128)}', space=vmem, size = 0x12000, scoped, tag = 'internal scratch']
  %s0 = inlined_call_operand.vmem [shape: f32[64,16], index: 0, kind: input, shape index: {}]
  %s1 = inlined_call_operand.vmem [shape: f32[1,16], index: 1, kind: input, shape index: {}]
  %s2 = inlined_call_operand.vmem [shape: f32[1,16], index: 2, kind: input, shape index: {}]
  %s3 = inlined_call_operand.vmem [shape: bf16[16,48], index: 3, kind: input, shape index: {}]
  %s4 = inlined_call_operand.vmem [shape: f32[64,48], index: 4, kind: output, shape index: {}]
  %s5 = sld [smem:[#allocation0]]
  $region26: #{tpu_custom_call.1} parent=0
    _
  %s7 = ssub.s32 1, %s5
  %s8 = scalar_select 0, %s7, %s5
  // Predicated region
  $region2: #{tpu_custom_call.1} parent=0 // pred_check
    _
  $region3: #{tpu_custom_call.1} parent=0 // pred_check_branch
    %10 = sbr.rel (0) target = $region5
  $region4: #{tpu_custom_call.1} parent=0 // pred_region
    _
  $region5: #{tpu_custom_call.1} parent=0 // pred_fallthru
    _
  // Predicated region
  $region6: #{tpu_custom_call.1} parent=0 // pred_check
    _
  $region7: #{tpu_custom_call.1} parent=0 // pred_check_branch
    %12 = sbr.rel (0) target = $region9
  $region8: #{tpu_custom_call.1} parent=0 // pred_region
    _
  $region9: #{tpu_custom_call.1} parent=0 // pred_fallthru
    _
  // Predicated region
  $region10: #{tpu_custom_call.1} parent=0 // pred_check
    _
  $region11: #{tpu_custom_call.1} parent=0 // pred_check_branch
    %14 = sbr.rel (0) target = $region13
  $region12: #{tpu_custom_call.1} parent=0 // pred_region
    _
  $region13: #{tpu_custom_call.1} parent=0 // pred_fallthru
    _
  // Predicated region
  $region14: #{tpu_custom_call.1} parent=0 // pred_check
    _
  $region15: #{tpu_custom_call.1} parent=0 // pred_check_branch
    %16 = sbr.rel (0) target = $region17
  $region16: #{tpu_custom_call.1} parent=0 // pred_region
    _
  $region17: #{tpu_custom_call.1} parent=0 // pred_fallthru
    _
  %v18 = vld [vmem:[%s0] sm:$0xff]
  %v19 = vld [vmem:[%s0 + $0x8] sm:$0xff]
  %v20 = vld [vmem:[%s0 + $0x10] sm:$0xff]
  %v21 = vld [vmem:[%s0 + $0x18] sm:$0xff]
  %v22 = vld [vmem:[%s0 + $0x20] sm:$0xff]
  %v23 = vld [vmem:[%s0 + $0x28] sm:$0xff]
  %v24 = vld [vmem:[%s0 + $0x30] sm:$0xff]
  %v25 = vld [vmem:[%s0 + $0x38] sm:$0xff]
  %v26 = vld [vmem:[%s1] sm:$0x1]
  %v27 = vld [vmem:[%s2] sm:$0x1]
  %vm28 = vcmask 130048
  %v29 = vsel %vm28, %v18, 0.0
  %30 = vadd.xlane.f32.xlu0 %v29
  %v31 = vpop.xlane.xlu0 %30
  %v32 = vsel %vm28, %v19, 0.0
  %33 = vadd.xlane.f32.xlu0 %v32
  %v34 = vpop.xlane.xlu0 %33
  %v35 = vsel %vm28, %v20, 0.0
  %36 = vadd.xlane.f32.xlu0 %v35
  %v37 = vpop.xlane.xlu0 %36
  %v38 = vsel %vm28, %v21, 0.0
  %39 = vadd.xlane.f32.xlu0 %v38
  %v40 = vpop.xlane.xlu0 %39
  %v41 = vsel %vm28, %v22, 0.0
  %42 = vadd.xlane.f32.xlu0 %v41
  %v43 = vpop.xlane.xlu0 %42
  %v44 = vsel %vm28, %v23, 0.0
  %45 = vadd.xlane.f32.xlu0 %v44
  %v46 = vpop.xlane.xlu0 %45
  %v47 = vsel %vm28, %v24, 0.0
  %48 = vadd.xlane.f32.xlu0 %v47
  %v49 = vpop.xlane.xlu0 %48
  %v50 = vsel %vm28, %v25, 0.0
  %51 = vadd.xlane.f32.xlu0 %v50
  %v52 = vpop.xlane.xlu0 %51
  %v53 = vrcp.pop 16.0
  %v54 = vmul.f32 %v31, %v53
  %v55 = vmul.f32 %v34, %v53
  %v56 = vmul.f32 %v37, %v53
  %v57 = vmul.f32 %v40, %v53
  %v58 = vmul.f32 %v43, %v53
  %v59 = vmul.f32 %v46, %v53
  %v60 = vmul.f32 %v49, %v53
  %v61 = vmul.f32 %v52, %v53
  %v62 = vsub.f32 %v18, %v54
  %v63 = vsub.f32 %v19, %v55
  %v64 = vsub.f32 %v20, %v56
  %v65 = vsub.f32 %v21, %v57
  %v66 = vsub.f32 %v22, %v58
  %v67 = vsub.f32 %v23, %v59
  %v68 = vsub.f32 %v24, %v60
  %v69 = vsub.f32 %v25, %v61
  %v70 = vmul.f32 %v62, %v62
  %v71 = vmul.f32 %v63, %v63
  %v72 = vmul.f32 %v64, %v64
  %v73 = vmul.f32 %v65, %v65
  %v74 = vmul.f32 %v66, %v66
  %v75 = vmul.f32 %v67, %v67
  %v76 = vmul.f32 %v68, %v68
  %v77 = vmul.f32 %v69, %v69
  %v78 = vsel %vm28, %v70, 0.0
  %79 = vadd.xlane.f32.xlu0 %v78
  %v80 = vpop.xlane.xlu0 %79
  %v81 = vsel %vm28, %v71, 0.0
  %82 = vadd.xlane.f32.xlu0 %v81
  %v83 = vpop.xlane.xlu0 %82
  %v84 = vsel %vm28, %v72, 0.0
  %85 = vadd.xlane.f32.xlu0 %v84
  %v86 = vpop.xlane.xlu0 %85
  %v87 = vsel %vm28, %v73, 0.0
  %88 = vadd.xlane.f32.xlu0 %v87
  %v89 = vpop.xlane.xlu0 %88
  %v90 = vsel %vm28, %v74, 0.0
  %91 = vadd.xlane.f32.xlu0 %v90
  %v92 = vpop.xlane.xlu0 %91
  %v93 = vsel %vm28, %v75, 0.0
  %94 = vadd.xlane.f32.xlu0 %v93
  %v95 = vpop.xlane.xlu0 %94
  %v96 = vsel %vm28, %v76, 0.0
  %97 = vadd.xlane.f32.xlu0 %v96
  %v98 = vpop.xlane.xlu0 %97
  %v99 = vsel %vm28, %v77, 0.0
  %100 = vadd.xlane.f32.xlu0 %v99
  %v101 = vpop.xlane.xlu0 %100
  %v102 = vmul.f32 %v80, %v53
  %v103 = vmul.f32 %v83, %v53
  %v104 = vmul.f32 %v86, %v53
  %v105 = vmul.f32 %v89, %v53
  %v106 = vmul.f32 %v92, %v53
  %v107 = vmul.f32 %v95, %v53
  %v108 = vmul.f32 %v98, %v53
  %v109 = vmul.f32 %v101, %v53
  %v110 = vadd.f32 %v102, 1e-05
  %v111 = vadd.f32 %v103, 1e-05
  %v112 = vadd.f32 %v104, 1e-05
  %v113 = vadd.f32 %v105, 1e-05
  %v114 = vadd.f32 %v106, 1e-05
  %v115 = vadd.f32 %v107, 1e-05
  %v116 = vadd.f32 %v108, 1e-05
  %v117 = vadd.f32 %v109, 1e-05
  %v118 = vrsqrt.pop %v110
  %v119 = vrsqrt.pop %v111
  %v120 = vrsqrt.pop %v112
  %v121 = vrsqrt.pop %v113
  %v122 = vrsqrt.pop %v114
  %v123 = vrsqrt.pop %v115
  %v124 = vrsqrt.pop %v116
  %v125 = vrsqrt.pop %v117
  %v126 = vmul.f32 %v62, %v118
  %v127 = vmul.f32 %v63, %v119
  %v128 = vmul.f32 %v64, %v120
  %v129 = vmul.f32 %v65, %v121
  %v130 = vmul.f32 %v66, %v122
  %v131 = vmul.f32 %v67, %v123
  %v132 = vmul.f32 %v68, %v124
  %v133 = vmul.f32 %v69, %v125
  %v135 = vlaneseq
  %v136 = vshrl.u32 %v135, 7
  %v137 = vsub.s32 0, %v136
  %v138 = vrot.slane %v26, %v137
  %v140 = vmul.f32 %v126, %v138
  %v141 = vmul.f32 %v127, %v138
  %v142 = vmul.f32 %v128, %v138
  %v143 = vmul.f32 %v129, %v138
  %v144 = vmul.f32 %v130, %v138
  %v145 = vmul.f32 %v131, %v138
  %v146 = vmul.f32 %v132, %v138
  %v147 = vmul.f32 %v133, %v138
  %v149 = vlaneseq
  %v150 = vshrl.u32 %v149, 7
  %v151 = vsub.s32 0, %v150
  %v152 = vrot.slane %v27, %v151
  %v154 = vadd.f32 %v140, %v152
  %v155 = vadd.f32 %v141, %v152
  %v156 = vadd.f32 %v142, %v152
  %v157 = vadd.f32 %v143, %v152
  %v158 = vadd.f32 %v144, %v152
  %v159 = vadd.f32 %v145, %v152
  %v160 = vadd.f32 %v146, %v152
  %v161 = vadd.f32 %v147, %v152
  %v162 = vpack.c.bf16 %v155, %v154
  %v163 = vpack.c.bf16 %v157, %v156
  %v164 = vpack.c.bf16 %v159, %v158
  %v165 = vpack.c.bf16 %v161, %v160
  %v166 = vld [vmem:[%s3] sm:$0xf]
  %v167 = vld [vmem:[%s3 + $0x4] sm:$0xf]
  %v170 = vunpack.c.l.b16 %v166
  %v171 = vunpack.c.l.b16 %v167
  %v172 = vpack.c.b16 %v171, %v170
  %v175 = vsel %vm28, %v162, 0
  %v178 = vsel %vm28, %v163, 0
  %v181 = vsel %vm28, %v164, 0
  %v184 = vsel %vm28, %v165, 0
  %186 = vmatprep.subr.bf16.mxu0 0
  %187 = vmatpush1.bf16.msra.mxu0 %v172
  %188 = vmatprep.subr.bf16.mxu0 0
  %189 = vmatpush1.bf16.msra.mxu0 0
  %190 = vmatprep.subr.bf16.mxu0 0
  %191 = vmatpush1.bf16.msra.mxu0 0
  %192 = vmatprep.subr.bf16.mxu0 0
  %193 = vmatpush1.bf16.msra.mxu0 0
  %194 = vmatprep.subr.bf16.mxu0 0
  %195 = vmatpush1.bf16.msra.mxu0 0
  %196 = vmatprep.subr.bf16.mxu0 0
  %197 = vmatpush1.bf16.msra.mxu0 0
  %198 = vmatprep.subr.bf16.mxu0 0
  %199 = vmatpush1.bf16.msra.mxu0 0
  %200 = vmatprep.subr.bf16.mxu0 0
  %201 = vmatpush1.bf16.msra.mxu0 0
  %202 = vmatprep.subr.bf16.mxu0 0
  %203 = vmatpush1.bf16.msra.mxu0 0
  %204 = vmatprep.subr.bf16.mxu0 0
  %205 = vmatpush1.bf16.msra.mxu0 0
  %206 = vmatprep.subr.bf16.mxu0 0
  %207 = vmatpush1.bf16.msra.mxu0 0
  %208 = vmatprep.subr.bf16.mxu0 0
  %209 = vmatpush1.bf16.msra.mxu0 0
  %210 = vmatprep.subr.bf16.mxu0 0
  %211 = vmatpush1.bf16.msra.mxu0 0
  %212 = vmatprep.subr.bf16.mxu0 0
  %213 = vmatpush1.bf16.msra.mxu0 0
  %214 = vmatprep.subr.bf16.mxu0 0
  %215 = vmatpush1.bf16.msra.mxu0 0
  %216 = vmatprep.subr.bf16.mxu0 0
  %217 = vmatpush1.bf16.msra.mxu0 0
  %218 = vmatprep.mubr.bf16.mxu0 0
  %219 = vmatmul.mubr.bf16.gmra.mrb[0].mxu0 %v175
  %v220 = vpop.f32.mrb[0].mxu0
  %v221 = vadd.f32 0.0, %v220
  %v222 = vpop.f32.mrb[0].mxu0
  %v223 = vpop.f32.mrb[0].mxu0
  %v224 = vadd.f32 0.0, %v223
  %v225 = vpop.f32.mrb[0].mxu0
  %226 = vmatprep.mubr.bf16.mxu0 0
  %227 = vmatmul.mubr.bf16.gmra.mrb[0].mxu0 %v178
  %v228 = vpop.f32.mrb[0].mxu0
  %v229 = vadd.f32 0.0, %v228
  %v230 = vpop.f32.mrb[0].mxu0
  %v231 = vpop.f32.mrb[0].mxu0
  %v232 = vadd.f32 0.0, %v231
  %v233 = vpop.f32.mrb[0].mxu0
  %234 = vmatprep.mubr.bf16.mxu0 0
  %235 = vmatmul.mubr.bf16.gmra.mrb[0].mxu0 %v181
  %v236 = vpop.f32.mrb[0].mxu0
  %v237 = vadd.f32 0.0, %v236
  %v238 = vpop.f32.mrb[0].mxu0
  %v239 = vpop.f32.mrb[0].mxu0
  %v240 = vadd.f32 0.0, %v239
  %v241 = vpop.f32.mrb[0].mxu0
  %242 = vmatprep.mubr.bf16.mxu0 0
  %243 = vmatmul.mubr.bf16.gmra.mrb[0].mxu0 %v184
  %v244 = vpop.f32.mrb[0].mxu0
  %v245 = vadd.f32 0.0, %v244
  %v246 = vpop.f32.mrb[0].mxu0
  %v247 = vpop.f32.mrb[0].mxu0
  %v248 = vadd.f32 0.0, %v247
  %v249 = vpop.f32.mrb[0].mxu0
  %250 = vdwg.mxu0
  %vm251 = vcmask 392192
  %252 = vst.msk [vmem:[%s4] sm:$0xff] %vm251, %v221
  %253 = vst.msk [vmem:[%s4 + $0x8] sm:$0xff] %vm251, %v224
  %254 = vst.msk [vmem:[%s4 + $0x10] sm:$0xff] %vm251, %v229
  %255 = vst.msk [vmem:[%s4 + $0x18] sm:$0xff] %vm251, %v232
  %256 = vst.msk [vmem:[%s4 + $0x20] sm:$0xff] %vm251, %v237
  %257 = vst.msk [vmem:[%s4 + $0x28] sm:$0xff] %vm251, %v240
  %258 = vst.msk [vmem:[%s4 + $0x30] sm:$0xff] %vm251, %v245
  %259 = vst.msk [vmem:[%s4 + $0x38] sm:$0xff] %vm251, %v248
  // Predicated region
  $region18: #{tpu_custom_call.1} parent=0 // pred_check
    _
  $region19: #{tpu_custom_call.1} parent=0 // pred_check_branch
    %261 = sbr.rel (0) target = $region21
  $region20: #{tpu_custom_call.1} parent=0 // pred_region
    _
  $region21: #{tpu_custom_call.1} parent=0 // pred_fallthru
    _
  // Predicated region
  $region22: #{tpu_custom_call.1} parent=0 // pred_check
    _
  $region23: #{tpu_custom_call.1} parent=0 // pred_check_branch
    %263 = sbr.rel (0) target = $region25
  $region24: #{tpu_custom_call.1} parent=0 // pred_region
    _
  $region25: #{tpu_custom_call.1} parent=0 // pred_fallthru
    _

</llo_original>
